<compile_context>
chip_gen: v7x
topology: tpu7x:2x2x1
jax: 0.10.0
libtpu: 0.0.40
codegen_flags: <defaults>
</compile_context>

<pallas_src>
import jax
import jax.numpy as jnp
import numpy as np
from jax.experimental import pallas as pl
from jax.experimental.pallas import tpu as pltpu

BN_EPS = 1e-5
LANE = 128


def _round_up(x, m):
    return ((x + m - 1) // m) * m


# ---------------------------------------------------------------------------
# Pallas kernels
# ---------------------------------------------------------------------------
def _conv_stats_kernel(p_ref, w_ref, ps_ref, pq_ref):
    """Conv-as-matmul tile -> ONLY per-tile partial BN statistics (no y write).

    p_ref : (tm, K)       bf16 im2col patch tile
    w_ref : (K, C_pad)    bf16 reshaped conv weights (resident)
    ps_ref: (1, 8, C_pad) f32 partial per-channel sum
    pq_ref: (1, 8, C_pad) f32 partial per-channel sum of squares
    """
    acc = jnp.dot(p_ref[...], w_ref[...], preferred_element_type=jnp.float32)
    tm, c = acc.shape
    # Fold tm rows down to 8 sublanes with pure VPU adds; zero-padded rows and
    # zero-padded channels contribute exactly 0, so no masking is needed.
    a3 = acc.reshape(tm // 8, 8, c)
    ps_ref[0] = jnp.sum(a3, axis=0)
    pq_ref[0] = jnp.sum(a3 * a3, axis=0)


def _conv_stats_store_kernel(p_ref, w_ref, y_ref, ps_ref, pq_ref):
    """As above, but also stores the conv result as a bf16 intermediate."""
    acc = jnp.dot(p_ref[...], w_ref[...], preferred_element_type=jnp.float32)
    y_ref[...] = acc.astype(y_ref.dtype)
    tm, c = acc.shape
    a3 = acc.reshape(tm // 8, 8, c)
    ps_ref[0] = jnp.sum(a3, axis=0)
    pq_ref[0] = jnp.sum(a3 * a3, axis=0)


def _conv_affine_relu_kernel(p_ref, w_ref, scale_ref, shift_ref, o_ref):
    """Recompute pass: redo the matmul and apply folded BN + ReLU directly."""
    acc = jnp.dot(p_ref[...], w_ref[...], preferred_element_type=jnp.float32)
    o_ref[...] = jnp.maximum(acc * scale_ref[...] + shift_ref[...], 0.0)


def _bn_relu_kernel(y_ref, scale_ref, shift_ref, o_ref):
    """Store-mode pass: bf16 intermediate -> f32 affine + ReLU (f32 VPU math)."""
    y = y_ref[...].astype(jnp.float32)
    o_ref[...] = jnp.maximum(y * scale_ref[...] + shift_ref[...], 0.0)


# ---------------------------------------------------------------------------
# Glue (plain JAX): im2col, VMEM budgeting, tile selection
# ---------------------------------------------------------------------------
def _im2col_nhwc(x_nchw, kh, kw, stride, padding, dilation):
    """bf16 patches built directly in (N*OH*OW, kh*kw*C) order (no 9x transpose)."""
    N, C, H, W = x_nchw.shape
    x = x_nchw.astype(jnp.bfloat16).transpose(0, 2, 3, 1)   # bf16 NHWC view
    xp = jnp.pad(x, ((0, 0), (padding, padding), (padding, padding), (0, 0)))
    Hp, Wp = H + 2 * padding, W + 2 * padding
    OH = (Hp - dilation * (kh - 1) - 1) // stride + 1
    OW = (Wp - dilation * (kw - 1) - 1) // stride + 1
    cols = []
    for i in range(kh):
        for j in range(kw):
            cols.append(
                xp[:,
                   i * dilation: i * dilation + (OH - 1) * stride + 1: stride,
                   j * dilation: j * dilation + (OW - 1) * stride + 1: stride,
                   :]
            )
    p = jnp.concatenate(cols, axis=-1)            # (N, OH, OW, kh*kw*C)
    return p.reshape(N * OH * OW, kh * kw * C), OH, OW


def _vmem_budget_bytes():
    try:
        cap = int(pltpu.get_tpu_info().vmem_capacity_bytes)   # 64 MiB v7x, 128 MiB v5e/v6e
    except Exception:
        cap = 64 * 1024 * 1024                                # conservative (v7x) fallback
    return int(cap * 3 // 4)                                  # compiler headroom


def _pick_tm(requested, M, K, c_pad, budget, store_mode):
    """Auto-grow tm toward 8192 rows, bounded by the max of both kernels'
    double-buffered working sets (incl. in-kernel f32 temporaries)."""
    m8 = _round_up(M, 8)
    k_lanes = _round_up(K, LANE)

    def need(t):
        # Kernel A: 2x bf16 patch tiles + resident bf16 weights
        #           + f32 acc & squared copy + stat output blocks.
        a = (2 * t * k_lanes * 2 + k_lanes * c_pad * 2
             + 2 * t * c_pad * 4 + 4 * 8 * c_pad * 4)
        if store_mode:
            a += 2 * t * c_pad * 2                      # bf16 y output tiles
            b = (2 * t * c_pad * 2                      # bf16 y input tiles
                 + t * c_pad * 4                        # f32 upcast temp
                 + 2 * t * c_pad * 4                    # f32 out tiles
                 + 4 * c_pad * 4)                       # scale/shift
        else:
            b = (2 * t * k_lanes * 2 + k_lanes * c_pad * 2
                 + t * c_pad * 4                        # f32 acc temp
                 + 2 * t * c_pad * 4                    # f32 out tiles
                 + 4 * c_pad * 4)
        return max(a, b)

    tm = 8192 if requested is None else int(requested)
    tm = min(_round_up(tm, 8), m8)
    while tm > 8 and need(tm) > budget:
        tm = max(8, _round_up(tm // 2, 8))
    tm = max(8, (tm // 8) * 8)

    # v7x megacore: if a single tile would cover everything but each half is
    # still a big tile, split in two so both TensorCores get work.
    if requested is None and _round_up(M, tm) == tm and tm >= 2048:
        tm = _round_up(pl.cdiv(M, 2), 8)
    return tm


def conv_bn_relu(x, w, gamma, beta, *, stride=1, padding=0, dilation=1, tm=None):
    N, C_in, H, W = x.shape
    C_out, _, KH, KW = w.shape

    patches, OH, OW = _im2col_nhwc(x, KH, KW, stride, padding, dilation)
    M, K = patches.shape

    # Lane-dense output channels (padded to a multiple of 128 -> full-width vst).
    C_pad = _round_up(max(C_out, LANE), LANE)

    # Weights reordered to (kh, kw, c_in) rows to match patch K layout; bf16 MXU
    # operands, zero-padded output channels.
    w2 = w.transpose(2, 3, 1, 0).reshape(K, C_out).astype(jnp.float32)
    w2 = jnp.pad(w2, ((0, 0), (0, C_pad - C_out))).astype(jnp.bfloat16)

    # Recompute (two matmul passes, no stored intermediate) when re-reading the
    # bf16 patches once more is cheaper than a bf16 intermediate round trip.
    recompute = (2 * K) <= (4 * C_pad)

    budget = _vmem_budget_bytes()
    tm_sel = _pick_tm(tm, M, K, C_pad, budget, store_mode=not recompute)
    M_pad = _round_up(M, tm_sel)
    if M_pad != M:
        patches = jnp.pad(patches, ((0, M_pad - M), (0, 0)))
    n_tiles = M_pad // tm_sel

    cparams = pltpu.CompilerParams(
        dimension_semantics=("parallel",),   # shard M tiles across TCs on v7x
        vmem_limit_bytes=budget,             # v5e's 16 MiB scoped default is too small
    )

    patch_spec = pl.BlockSpec((tm_sel, K), lambda i: (i, 0))
    w_spec = pl.BlockSpec((K, C_pad), lambda i: (0, 0))
    stat_spec = pl.BlockSpec((1, 8, C_pad), lambda i: (i, 0, 0))
    slab_spec = pl.BlockSpec((tm_sel, C_pad), lambda i: (i, 0))
    vec_spec = pl.BlockSpec((1, C_pad), lambda i: (0, 0))

    stats_cost = pl.CostEstimate(
        flops=2 * M_pad * K * C_pad + 2 * M_pad * C_pad,
        transcendentals=0,
        bytes_accessed=(M_pad * K * 2 + K * C_pad * 2
                        + 2 * n_tiles * 8 * C_pad * 4
                        + (0 if recompute else M_pad * C_pad * 2)),
    )

    # --- Kernel A: conv matmul + per-tile partial BN statistics ---------------
    if recompute:
        psum, psq = pl.pallas_call(
            _conv_stats_kernel,
            out_shape=(
                jax.ShapeDtypeStruct((n_tiles, 8, C_pad), jnp.float32),
                jax.ShapeDtypeStruct((n_tiles, 8, C_pad), jnp.float32),
            ),
            grid_spec=pltpu.PrefetchScalarGridSpec(
                num_scalar_prefetch=0,
                grid=(n_tiles,),
                in_specs=[patch_spec, w_spec],
                out_specs=[stat_spec, stat_spec],
            ),
            compiler_params=cparams,
            cost_estimate=stats_cost,
        )(patches, w2)
        y = None
    else:
        y, psum, psq = pl.pallas_call(
            _conv_stats_store_kernel,
            out_shape=(
                jax.ShapeDtypeStruct((M_pad, C_pad), jnp.bfloat16),
                jax.ShapeDtypeStruct((n_tiles, 8, C_pad), jnp.float32),
                jax.ShapeDtypeStruct((n_tiles, 8, C_pad), jnp.float32),
            ),
            grid_spec=pltpu.PrefetchScalarGridSpec(
                num_scalar_prefetch=0,
                grid=(n_tiles,),
                in_specs=[patch_spec, w_spec],
                out_specs=[slab_spec, stat_spec, stat_spec],
            ),
            compiler_params=cparams,
            cost_estimate=stats_cost,
        )(patches, w2)

    # --- Tiny cross-tile BN finalize in plain JAX ------------------------------
    cnt = jnp.float32(M)                               # real rows; padded rows sum to 0
    s = jnp.sum(psum, axis=(0, 1))
    q = jnp.sum(psq, axis=(0, 1))
    mean = s / cnt
    var = jnp.maximum(q / cnt - mean * mean, 0.0)      # biased batch var (PyTorch BN)
    inv = jax.lax.rsqrt(var + BN_EPS)
    gamma_p = jnp.pad(gamma.astype(jnp.float32), (0, C_pad - C_out))
    beta_p = jnp.pad(beta.astype(jnp.float32), (0, C_pad - C_out))
    scale = (gamma_p * inv).reshape(1, C_pad)
    shift = (beta_p - mean * gamma_p * inv).reshape(1, C_pad)

    # --- Kernel B: output pass --------------------------------------------------
    if recompute:
        out_cost = pl.CostEstimate(
            flops=2 * M_pad * K * C_pad + 3 * M_pad * C_pad,
            transcendentals=0,
            bytes_accessed=(M_pad * K * 2 + K * C_pad * 2
                            + M_pad * C_pad * 4 + 2 * C_pad * 4),
        )
        out_flat = pl.pallas_call(
            _conv_affine_relu_kernel,
            out_shape=jax.ShapeDtypeStruct((M_pad, C_pad), jnp.float32),
            grid_spec=pltpu.PrefetchScalarGridSpec(
                num_scalar_prefetch=0,
                grid=(n_tiles,),
                in_specs=[patch_spec, w_spec, vec_spec, vec_spec],
                out_specs=slab_spec,
            ),
            compiler_params=cparams,
            cost_estimate=out_cost,
        )(patches, w2, scale, shift)
    else:
        out_cost = pl.CostEstimate(
            flops=3 * M_pad * C_pad,
            transcendentals=0,
            bytes_accessed=M_pad * C_pad * 2 + M_pad * C_pad * 4 + 2 * C_pad * 4,
        )
        out_flat = pl.pallas_call(
            _bn_relu_kernel,
            out_shape=jax.ShapeDtypeStruct((M_pad, C_pad), jnp.float32),
            grid_spec=pltpu.PrefetchScalarGridSpec(
                num_scalar_prefetch=0,
                grid=(n_tiles,),
                in_specs=[slab_spec, vec_spec, vec_spec],
                out_specs=slab_spec,
            ),
            compiler_params=cparams,
            cost_estimate=out_cost,
        )(y, scale, shift)

    out = out_flat[:M, :C_out].reshape(N, OH, OW, C_out)
    return out.transpose(0, 3, 1, 2)                   # back to NCHW


# ---------------------------------------------------------------------------
# Pure-JAX reference for verification
# ---------------------------------------------------------------------------
def _reference(x, w, gamma, beta, stride, padding, dilation):
    y = jax.lax.conv_general_dilated(
        x, w,
        window_strides=(stride, stride),
        padding=[(padding, padding), (padding, padding)],
        rhs_dilation=(dilation, dilation),
        dimension_numbers=("NCHW", "OIHW", "NCHW"),
    )
    mean = jnp.mean(y, axis=(0, 2, 3), keepdims=True)
    var = jnp.mean((y - mean) ** 2, axis=(0, 2, 3), keepdims=True)
    yn = (y - mean) * jax.lax.rsqrt(var + BN_EPS)
    yn = yn * gamma.reshape(1, -1, 1, 1) + beta.reshape(1, -1, 1, 1)
    return jnp.maximum(yn, 0.0)


if __name__ == "__main__":
    # ConvBnRelu(in_channels=4, out_channels=8, kernel_size=3, stride=1, padding=1, bias=False)
    N, C_in, H, W = 2, 4, 16, 16
    C_out, KH, KW = 8, 3, 3
    stride, padding, dilation = 1, 1, 1

    key = jax.random.PRNGKey(0)
    kx, kw = jax.random.split(key)
    x = jax.random.normal(kx, (N, C_in, H, W), dtype=jnp.float32)
    w = jax.random.normal(kw, (C_out, C_in, KH, KW), dtype=jnp.float32) * 0.1
    gamma = jnp.ones((C_out,), dtype=jnp.float32)   # PyTorch BN init: weight = 1
    beta = jnp.zeros((C_out,), dtype=jnp.float32)   # PyTorch BN init: bias = 0

    ref = _reference(x, w, gamma, beta, stride, padding, dilation)

    # Auto tile size (recompute mode: K=36 << 2*C_pad).
    out = conv_bn_relu(x, w, gamma, beta,
                       stride=stride, padding=padding, dilation=dilation)
    out = jax.block_until_ready(out)
    np.testing.assert_allclose(np.asarray(out), np.asarray(ref), atol=2e-2, rtol=2e-2)

    # Small explicit tile: exercises the multi-tile cross-tile BN statistics path.
    out2 = conv_bn_relu(x, w, gamma, beta,
                        stride=stride, padding=padding, dilation=dilation, tm=128)
    out2 = jax.block_until_ready(out2)
    np.testing.assert_allclose(np.asarray(out2), np.asarray(ref), atol=2e-2, rtol=2e-2)

    # Wider C_in (K=288 > 2*C_pad): exercises the bf16-intermediate (store) path.
    N3, C_in3, H3, W3, C_out3 = 2, 32, 8, 8, 8
    k3x, k3w, k3g, k3b = jax.random.split(jax.random.PRNGKey(0), 4)
    x3 = jax.random.normal(k3x, (N3, C_in3, H3, W3), dtype=jnp.float32)
    w3 = jax.random.normal(k3w, (C_out3, C_in3, KH, KW), dtype=jnp.float32) * 0.1
    g3 = 1.0 + 0.1 * jax.random.normal(k3g, (C_out3,), dtype=jnp.float32)
    b3 = 0.1 * jax.random.normal(k3b, (C_out3,), dtype=jnp.float32)
    ref3 = _reference(x3, w3, g3, b3, stride, padding, dilation)
    out3 = conv_bn_relu(x3, w3, g3, b3,
                        stride=stride, padding=padding, dilation=dilation)
    out3 = jax.block_until_ready(out3)
    np.testing.assert_allclose(np.asarray(out3), np.asarray(ref3), atol=3e-2, rtol=2e-2)

    print("KERNEL_OK")
</pallas_src>

<mosaic_0001>
module attributes {stable_mosaic.version = 11 : i64} {
  func.func @_conv_stats_kernel(%arg0: i32, %arg1: memref<512x36xbf16, #tpu.memory_space<vmem>>, %arg2: memref<36x128xbf16, #tpu.memory_space<vmem>>, %arg3: memref<1x8x128xf32, #tpu.memory_space<vmem>>, %arg4: memref<1x8x128xf32, #tpu.memory_space<vmem>>) attributes {dimension_semantics = [#tpu.dimension_semantics<parallel>], iteration_bounds = array<i64: 1>, scalar_prefetch = 0 : i64, scratch_operands = 0 : i64, tpu.core_type = #tpu.core_type<tc>, window_params = [{transform_indices = @transform_0, window_bounds = array<i64: 512, 36>}, {pipeline_mode = #tpu.pipeline_mode<synchronous>, transform_indices = @transform_1, window_bounds = array<i64: 36, 128>}, {transform_indices = @transform_2, window_bounds = array<i64: 1, 8, 128>}, {transform_indices = @transform_3, window_bounds = array<i64: 1, 8, 128>}]} {
    %c0 = arith.constant 0 : index
    %c0_0 = arith.constant 0 : index
    %0 = vector.load %arg1[%c0, %c0_0] : memref<512x36xbf16, #tpu.memory_space<vmem>>, vector<512x36xbf16>
    %c0_1 = arith.constant 0 : index
    %c0_2 = arith.constant 0 : index
    %1 = vector.load %arg2[%c0_1, %c0_2] : memref<36x128xbf16, #tpu.memory_space<vmem>>, vector<36x128xbf16>
    %cst = arith.constant dense<0.000000e+00> : vector<512x128xf32>
    %2 = tpu.matmul %0, %1, %cst {dimension_numbers = #tpu.dot_dimension_numbers<[1], [0], [0], [1], [0, 0, 1, 1], [], []>} : vector<512x36xbf16>, vector<36x128xbf16>, vector<512x128xf32> -> vector<512x128xf32>
    %3 = vector.shape_cast %2 : vector<512x128xf32> to vector<64x8x128xf32>
    %cst_3 = arith.constant dense<0.000000e+00> : vector<8x128xf32>
    %4 = vector.multi_reduction <add>, %3, %cst_3 [0] : vector<64x8x128xf32> to vector<8x128xf32>
    %c0_4 = arith.constant 0 : index
    %c0_5 = arith.constant 0 : index
    %c0_6 = arith.constant 0 : index
    %5 = vector.load %arg3[%c0_4, %c0_5, %c0_6] : memref<1x8x128xf32, #tpu.memory_space<vmem>>, vector<1x8x128xf32>
    %6 = vector.shape_cast %5 : vector<1x8x128xf32> to vector<8x128xf32>
    %7 = vector.shape_cast %4 : vector<8x128xf32> to vector<1x8x128xf32>
    tpu.vector_store %arg3[%c0_4, %c0_5, %c0_6], %7 {strides = array<i32>} : memref<1x8x128xf32, #tpu.memory_space<vmem>>, vector<1x8x128xf32>,
    %8 = arith.mulf %3, %3 : vector<64x8x128xf32>
    %cst_7 = arith.constant dense<0.000000e+00> : vector<8x128xf32>
    %9 = vector.multi_reduction <add>, %8, %cst_7 [0] : vector<64x8x128xf32> to vector<8x128xf32>
    %c0_8 = arith.constant 0 : index
    %c0_9 = arith.constant 0 : index
    %c0_10 = arith.constant 0 : index
    %10 = vector.load %arg4[%c0_8, %c0_9, %c0_10] : memref<1x8x128xf32, #tpu.memory_space<vmem>>, vector<1x8x128xf32>
    %11 = vector.shape_cast %10 : vector<1x8x128xf32> to vector<8x128xf32>
    %12 = vector.shape_cast %9 : vector<8x128xf32> to vector<1x8x128xf32>
    tpu.vector_store %arg4[%c0_8, %c0_9, %c0_10], %12 {strides = array<i32>} : memref<1x8x128xf32, #tpu.memory_space<vmem>>, vector<1x8x128xf32>,
    return
  }
  func.func @transform_0(%arg0: i32) -> (i32, i32) {
    %c0_i32 = arith.constant 0 : i32
    %c0_i32_0 = arith.constant 0 : i32
    return %arg0, %c0_i32 : i32, i32
  }
  func.func @transform_1(%arg0: i32) -> (i32, i32) {
    %c0_i32 = arith.constant 0 : i32
    %c0_i32_0 = arith.constant 0 : i32
    %c0_i32_1 = arith.constant 0 : i32
    return %c0_i32, %c0_i32_0 : i32, i32
  }
  func.func @transform_2(%arg0: i32) -> (i32, i32, i32) {
    %c0_i32 = arith.constant 0 : i32
    %c0_i32_0 = arith.constant 0 : i32
    %c0_i32_1 = arith.constant 0 : i32
    return %arg0, %c0_i32, %c0_i32_0 : i32, i32, i32
  }
  func.func @transform_3(%arg0: i32) -> (i32, i32, i32) {
    %c0_i32 = arith.constant 0 : i32
    %c0_i32_0 = arith.constant 0 : i32
    %c0_i32_1 = arith.constant 0 : i32
    return %arg0, %c0_i32, %c0_i32_0 : i32, i32, i32
  }
}

</mosaic_0001>

<llo_original>
// kernel: tpu_custom_call.1
$region0: #{tpu_custom_call.1}
  #allocation0 [shape = 'u32[]', space=smem, size = 0x4, offset = 0x4, fixed_abs, tag = 'smem constant byte address 0x4 - core index']
  #allocation1 [shape = 'u32[144,128]{1,0:T(1,128)}', space=vmem, size = 0x12000, scoped, tag = 'internal scratch']
  %s0 = inlined_call_operand.vmem [shape: bf16[512,36], index: 0, kind: input, shape index: {}]
  %s1 = inlined_call_operand.vmem [shape: bf16[36,128], index: 1, kind: input, shape index: {}]
  %s2 = inlined_call_operand.hbm [shape: f32[1,8,128], index: 2, kind: output, shape index: {0}]
  %s3 = inlined_call_operand.hbm [shape: f32[1,8,128], index: 3, kind: output, shape index: {1}]
  %4 = xla_tuple %s2, %s3
  %s5 = sld [smem:[#allocation0]]
  $region26: #{tpu_custom_call.1} parent=0
    _
  %s7 = ssub.s32 1, %s5
  %s8 = scalar_select 0, %s7, %s5
  $region1: #{tpu_custom_call.1} parent=0
    #allocation2 [shape = 'u8[4096]{0}', space=vmem, size = 0x1000, scoped, tag = 'output window, operand 0, single buffered']
    #allocation3 [shape = 's32[1]{0}', space=sflag, size = 0x4, scoped, tag = 'scoped memory for tpu_custom_call.1']
    #allocation4 [shape = 'u8[4096]{0}', space=vmem, size = 0x1000, scoped, tag = 'output window, operand 1, single buffered']
    #allocation5 [shape = 's32[1]{0}', space=sflag, size = 0x4, scoped, tag = 'scoped memory for tpu_custom_call.1']
    %9 = vsyncpa [#allocation3], 0
    %10 = vsyncpa [#allocation5], 0
    // Predicated region
    $region2: #{tpu_custom_call.1} parent=1 // pred_check
      _
    $region3: #{tpu_custom_call.1} parent=1 // pred_check_branch
      %12 = sbr.rel (0) target = $region5
    $region4: #{tpu_custom_call.1} parent=1 // pred_region
      _
    $region5: #{tpu_custom_call.1} parent=1 // pred_fallthru
      _
    // Predicated region
    $region6: #{tpu_custom_call.1} parent=1 // pred_check
      _
    $region7: #{tpu_custom_call.1} parent=1 // pred_check_branch
      %14 = sbr.rel (0) target = $region9
    $region8: #{tpu_custom_call.1} parent=1 // pred_region
      _
    $region9: #{tpu_custom_call.1} parent=1 // pred_fallthru
      _
    %v16 = vld [vmem:[%s0] sm:$0xf]
    %v17 = vld [vmem:[%s0 + $0x4] sm:$0xf]
    %v18 = vld [vmem:[%s0 + $0x8] sm:$0xf]
    %v19 = vld [vmem:[%s0 + $0xc] sm:$0xf]
    %v20 = vld [vmem:[%s0 + $0x10] sm:$0xf]
    %v21 = vld [vmem:[%s0 + $0x14] sm:$0xf]
    %v22 = vld [vmem:[%s0 + $0x18] sm:$0xf]
    %v23 = vld [vmem:[%s0 + $0x1c] sm:$0xf]
    %v24 = vld [vmem:[%s0 + $0x20] sm:$0xf]
    %v25 = vld [vmem:[%s0 + $0x24] sm:$0xf]
    %v26 = vld [vmem:[%s0 + $0x28] sm:$0xf]
    %v27 = vld [vmem:[%s0 + $0x2c] sm:$0xf]
    %v28 = vld [vmem:[%s0 + $0x30] sm:$0xf]
    %v29 = vld [vmem:[%s0 + $0x34] sm:$0xf]
    %v30 = vld [vmem:[%s0 + $0x38] sm:$0xf]
    %v31 = vld [vmem:[%s0 + $0x3c] sm:$0xf]
    %v32 = vld [vmem:[%s0 + $0x40] sm:$0xf]
    %v33 = vld [vmem:[%s0 + $0x44] sm:$0xf]
    %v34 = vld [vmem:[%s0 + $0x48] sm:$0xf]
    %v35 = vld [vmem:[%s0 + $0x4c] sm:$0xf]
    %v36 = vld [vmem:[%s0 + $0x50] sm:$0xf]
    %v37 = vld [vmem:[%s0 + $0x54] sm:$0xf]
    %v38 = vld [vmem:[%s0 + $0x58] sm:$0xf]
    %v39 = vld [vmem:[%s0 + $0x5c] sm:$0xf]
    %v40 = vld [vmem:[%s0 + $0x60] sm:$0xf]
    %v41 = vld [vmem:[%s0 + $0x64] sm:$0xf]
    %v42 = vld [vmem:[%s0 + $0x68] sm:$0xf]
    %v43 = vld [vmem:[%s0 + $0x6c] sm:$0xf]
    %v44 = vld [vmem:[%s0 + $0x70] sm:$0xf]
    %v45 = vld [vmem:[%s0 + $0x74] sm:$0xf]
    %v46 = vld [vmem:[%s0 + $0x78] sm:$0xf]
    %v47 = vld [vmem:[%s0 + $0x7c] sm:$0xf]
    %v48 = vld [vmem:[%s0 + $0x80] sm:$0xf]
    %v49 = vld [vmem:[%s0 + $0x84] sm:$0xf]
    %v50 = vld [vmem:[%s0 + $0x88] sm:$0xf]
    %v51 = vld [vmem:[%s0 + $0x8c] sm:$0xf]
    %v52 = vld [vmem:[%s0 + $0x90] sm:$0xf]
    %v53 = vld [vmem:[%s0 + $0x94] sm:$0xf]
    %v54 = vld [vmem:[%s0 + $0x98] sm:$0xf]
    %v55 = vld [vmem:[%s0 + $0x9c] sm:$0xf]
    %v56 = vld [vmem:[%s0 + $0xa0] sm:$0xf]
    %v57 = vld [vmem:[%s0 + $0xa4] sm:$0xf]
    %v58 = vld [vmem:[%s0 + $0xa8] sm:$0xf]
    %v59 = vld [vmem:[%s0 + $0xac] sm:$0xf]
    %v60 = vld [vmem:[%s0 + $0xb0] sm:$0xf]
    %v61 = vld [vmem:[%s0 + $0xb4] sm:$0xf]
    %v62 = vld [vmem:[%s0 + $0xb8] sm:$0xf]
    %v63 = vld [vmem:[%s0 + $0xbc] sm:$0xf]
    %v64 = vld [vmem:[%s0 + $0xc0] sm:$0xf]
    %v65 = vld [vmem:[%s0 + $0xc4] sm:$0xf]
    %v66 = vld [vmem:[%s0 + $0xc8] sm:$0xf]
    %v67 = vld [vmem:[%s0 + $0xcc] sm:$0xf]
    %v68 = vld [vmem:[%s0 + $0xd0] sm:$0xf]
    %v69 = vld [vmem:[%s0 + $0xd4] sm:$0xf]
    %v70 = vld [vmem:[%s0 + $0xd8] sm:$0xf]
    %v71 = vld [vmem:[%s0 + $0xdc] sm:$0xf]
    %v72 = vld [vmem:[%s0 + $0xe0] sm:$0xf]
    %v73 = vld [vmem:[%s0 + $0xe4] sm:$0xf]
    %v74 = vld [vmem:[%s0 + $0xe8] sm:$0xf]
    %v75 = vld [vmem:[%s0 + $0xec] sm:$0xf]
    %v76 = vld [vmem:[%s0 + $0xf0] sm:$0xf]
    %v77 = vld [vmem:[%s0 + $0xf4] sm:$0xf]
    %v78 = vld [vmem:[%s0 + $0xf8] sm:$0xf]
    %v79 = vld [vmem:[%s0 + $0xfc] sm:$0xf]
    %v80 = vld [vmem:[%s1] sm:$0xf]
    %v81 = vld [vmem:[%s1 + $0x4] sm:$0xf]
    %v82 = vld [vmem:[%s1 + $0x8] sm:$0xf]
    %v83 = vld [vmem:[%s1 + $0xc] sm:$0xf]
    %v84 = vld [vmem:[%s1 + $0x10] sm:$0x3]
    %v149 = vunpack.c.l.b16 %v16
    %v150 = vunpack.c.l.b16 %v17
    %v151 = vunpack.c.l.b16 %v18
    %v152 = vunpack.c.l.b16 %v19
    %v153 = vunpack.c.l.b16 %v20
    %v154 = vunpack.c.l.b16 %v21
    %v155 = vunpack.c.l.b16 %v22
    %v156 = vunpack.c.l.b16 %v23
    %v157 = vunpack.c.l.b16 %v24
    %v158 = vunpack.c.l.b16 %v25
    %v159 = vunpack.c.l.b16 %v26
    %v160 = vunpack.c.l.b16 %v27
    %v161 = vunpack.c.l.b16 %v28
    %v162 = vunpack.c.l.b16 %v29
    %v163 = vunpack.c.l.b16 %v30
    %v164 = vunpack.c.l.b16 %v31
    %v165 = vunpack.c.l.b16 %v32
    %v166 = vunpack.c.l.b16 %v33
    %v167 = vunpack.c.l.b16 %v34
    %v168 = vunpack.c.l.b16 %v35
    %v169 = vunpack.c.l.b16 %v36
    %v170 = vunpack.c.l.b16 %v37
    %v171 = vunpack.c.l.b16 %v38
    %v172 = vunpack.c.l.b16 %v39
    %v173 = vunpack.c.l.b16 %v40
    %v174 = vunpack.c.l.b16 %v41
    %v175 = vunpack.c.l.b16 %v42
    %v176 = vunpack.c.l.b16 %v43
    %v177 = vunpack.c.l.b16 %v44
    %v178 = vunpack.c.l.b16 %v45
    %v179 = vunpack.c.l.b16 %v46
    %v180 = vunpack.c.l.b16 %v47
    %v181 = vunpack.c.l.b16 %v48
    %v182 = vunpack.c.l.b16 %v49
    %v183 = vunpack.c.l.b16 %v50
    %v184 = vunpack.c.l.b16 %v51
    %v185 = vunpack.c.l.b16 %v52
    %v186 = vunpack.c.l.b16 %v53
    %v187 = vunpack.c.l.b16 %v54
    %v188 = vunpack.c.l.b16 %v55
    %v189 = vunpack.c.l.b16 %v56
    %v190 = vunpack.c.l.b16 %v57
    %v191 = vunpack.c.l.b16 %v58
    %v192 = vunpack.c.l.b16 %v59
    %v193 = vunpack.c.l.b16 %v60
    %v194 = vunpack.c.l.b16 %v61
    %v195 = vunpack.c.l.b16 %v62
    %v196 = vunpack.c.l.b16 %v63
    %v197 = vunpack.c.l.b16 %v64
    %v198 = vunpack.c.l.b16 %v65
    %v199 = vunpack.c.l.b16 %v66
    %v200 = vunpack.c.l.b16 %v67
    %v201 = vunpack.c.l.b16 %v68
    %v202 = vunpack.c.l.b16 %v69
    %v203 = vunpack.c.l.b16 %v70
    %v204 = vunpack.c.l.b16 %v71
    %v205 = vunpack.c.l.b16 %v72
    %v206 = vunpack.c.l.b16 %v73
    %v207 = vunpack.c.l.b16 %v74
    %v208 = vunpack.c.l.b16 %v75
    %v209 = vunpack.c.l.b16 %v76
    %v210 = vunpack.c.l.b16 %v77
    %v211 = vunpack.c.l.b16 %v78
    %v212 = vunpack.c.l.b16 %v79
    %v213 = vpack.c.b16 %v150, %v149
    %v214 = vpack.c.b16 %v152, %v151
    %v215 = vpack.c.b16 %v154, %v153
    %v216 = vpack.c.b16 %v156, %v155
    %v217 = vpack.c.b16 %v158, %v157
    %v218 = vpack.c.b16 %v160, %v159
    %v219 = vpack.c.b16 %v162, %v161
    %v220 = vpack.c.b16 %v164, %v163
    %v221 = vpack.c.b16 %v166, %v165
    %v222 = vpack.c.b16 %v168, %v167
    %v223 = vpack.c.b16 %v170, %v169
    %v224 = vpack.c.b16 %v172, %v171
    %v225 = vpack.c.b16 %v174, %v173
    %v226 = vpack.c.b16 %v176, %v175
    %v227 = vpack.c.b16 %v178, %v177
    %v228 = vpack.c.b16 %v180, %v179
    %v229 = vpack.c.b16 %v182, %v181
    %v230 = vpack.c.b16 %v184, %v183
    %v231 = vpack.c.b16 %v186, %v185
    %v232 = vpack.c.b16 %v188, %v187
    %v233 = vpack.c.b16 %v190, %v189
    %v234 = vpack.c.b16 %v192, %v191
    %v235 = vpack.c.b16 %v194, %v193
    %v236 = vpack.c.b16 %v196, %v195
    %v237 = vpack.c.b16 %v198, %v197
    %v238 = vpack.c.b16 %v200, %v199
    %v239 = vpack.c.b16 %v202, %v201
    %v240 = vpack.c.b16 %v204, %v203
    %v241 = vpack.c.b16 %v206, %v205
    %v242 = vpack.c.b16 %v208, %v207
    %v243 = vpack.c.b16 %v210, %v209
    %v244 = vpack.c.b16 %v212, %v211
    %v250 = vunpack.c.l.b16 %v80
    %v251 = vunpack.c.l.b16 %v81
    %v252 = vunpack.c.l.b16 %v82
    %v253 = vunpack.c.l.b16 %v83
    %v254 = vunpack.c.l.b16 %v84
    %v255 = vpack.c.b16 %v251, %v250
    %v256 = vpack.c.b16 %v253, %v252
    %v257 = vpack.c.b16 %v254, %v254
    %vm260 = vcmask 293888
    %v262 = vsel %vm260, %v213, 0
    %v265 = vsel %vm260, %v214, 0
    %v268 = vsel %vm260, %v215, 0
    %v271 = vsel %vm260, %v216, 0
    %v274 = vsel %vm260, %v217, 0
    %v277 = vsel %vm260, %v218, 0
    %v280 = vsel %vm260, %v219, 0
    %v283 = vsel %vm260, %v220, 0
    %v286 = vsel %vm260, %v221, 0
    %v289 = vsel %vm260, %v222, 0
    %v292 = vsel %vm260, %v223, 0
    %v295 = vsel %vm260, %v224, 0
    %v298 = vsel %vm260, %v225, 0
    %v301 = vsel %vm260, %v226, 0
    %v304 = vsel %vm260, %v227, 0
    %v307 = vsel %vm260, %v228, 0
    %v310 = vsel %vm260, %v229, 0
    %v313 = vsel %vm260, %v230, 0
    %v316 = vsel %vm260, %v231, 0
    %v319 = vsel %vm260, %v232, 0
    %v322 = vsel %vm260, %v233, 0
    %v325 = vsel %vm260, %v234, 0
    %v328 = vsel %vm260, %v235, 0
    %v331 = vsel %vm260, %v236, 0
    %v334 = vsel %vm260, %v237, 0
    %v337 = vsel %vm260, %v238, 0
    %v340 = vsel %vm260, %v239, 0
    %v343 = vsel %vm260, %v240, 0
    %v346 = vsel %vm260, %v241, 0
    %v349 = vsel %vm260, %v242, 0
    %v352 = vsel %vm260, %v243, 0
    %v355 = vsel %vm260, %v244, 0
    %vm357 = vcmask 1041408
    %v359 = vsel %vm357, %v257, 0
    %361 = vmatprep.subr.bf16.mxu0 0
    %362 = vmatpush1.bf16.msra.mxu0 %v255
    %363 = vmatprep.subr.bf16.mxu0 0
    %364 = vmatpush1.bf16.msra.mxu0 %v256
    %365 = vmatprep.subr.bf16.mxu0 0
    %366 = vmatpush1.bf16.msra.mxu0 %v359
    %367 = vmatprep.subr.bf16.mxu0 0
    %368 = vmatpush1.bf16.msra.mxu0 0
    %369 = vmatprep.subr.bf16.mxu0 0
    %370 = vmatpush1.bf16.msra.mxu0 0
    %371 = vmatprep.subr.bf16.mxu0 0
    %372 = vmatpush1.bf16.msra.mxu0 0
    %373 = vmatprep.subr.bf16.mxu0 0
    %374 = vmatpush1.bf16.msra.mxu0 0
    %375 = vmatprep.subr.bf16.mxu0 0
    %376 = vmatpush1.bf16.msra.mxu0 0
    %377 = vmatprep.subr.bf16.mxu0 0
    %378 = vmatpush1.bf16.msra.mxu0 0
    %379 = vmatprep.subr.bf16.mxu0 0
    %380 = vmatpush1.bf16.msra.mxu0 0
    %381 = vmatprep.subr.bf16.mxu0 0
    %382 = vmatpush1.bf16.msra.mxu0 0
    %383 = vmatprep.subr.bf16.mxu0 0
    %384 = vmatpush1.bf16.msra.mxu0 0
    %385 = vmatprep.subr.bf16.mxu0 0
    %386 = vmatpush1.bf16.msra.mxu0 0
    %387 = vmatprep.subr.bf16.mxu0 0
    %388 = vmatpush1.bf16.msra.mxu0 0
    %389 = vmatprep.subr.bf16.mxu0 0
    %390 = vmatpush1.bf16.msra.mxu0 0
    %391 = vmatprep.subr.bf16.mxu0 0
    %392 = vmatpush1.bf16.msra.mxu0 0
    %393 = vmatprep.mubr.bf16.mxu0 0
    %394 = vmatmul.mubr.bf16.gmra.mrb[0].mxu0 %v262
    %v395 = vpop.f32.mrb[0].mxu0
    %v396 = vadd.f32 0.0, %v395
    %v397 = vpop.f32.mrb[0].mxu0
    %v398 = vpop.f32.mrb[0].mxu0
    %v399 = vadd.f32 0.0, %v398
    %v400 = vpop.f32.mrb[0].mxu0
    %401 = vmatprep.mubr.bf16.mxu0 0
    %402 = vmatmul.mubr.bf16.gmra.mrb[0].mxu0 %v265
    %v403 = vpop.f32.mrb[0].mxu0
    %v404 = vadd.f32 0.0, %v403
    %v405 = vpop.f32.mrb[0].mxu0
    %v406 = vpop.f32.mrb[0].mxu0
    %v407 = vadd.f32 0.0, %v406
    %v408 = vpop.f32.mrb[0].mxu0
    %409 = vmatprep.mubr.bf16.mxu0 0
    %410 = vmatmul.mubr.bf16.gmra.mrb[0].mxu0 %v268
    %v411 = vpop.f32.mrb[0].mxu0
    %v412 = vadd.f32 0.0, %v411
    %v413 = vpop.f32.mrb[0].mxu0
    %v414 = vpop.f32.mrb[0].mxu0
    %v415 = vadd.f32 0.0, %v414
    %v416 = vpop.f32.mrb[0].mxu0
    %417 = vmatprep.mubr.bf16.mxu0 0
    %418 = vmatmul.mubr.bf16.gmra.mrb[0].mxu0 %v271
    %v419 = vpop.f32.mrb[0].mxu0
    %v420 = vadd.f32 0.0, %v419
    %v421 = vpop.f32.mrb[0].mxu0
    %v422 = vpop.f32.mrb[0].mxu0
    %v423 = vadd.f32 0.0, %v422
    %v424 = vpop.f32.mrb[0].mxu0
    %425 = vmatprep.mubr.bf16.mxu0 0
    %426 = vmatmul.mubr.bf16.gmra.mrb[0].mxu0 %v274
    %v427 = vpop.f32.mrb[0].mxu0
    %v428 = vadd.f32 0.0, %v427
    %v429 = vpop.f32.mrb[0].mxu0
    %v430 = vpop.f32.mrb[0].mxu0
    %v431 = vadd.f32 0.0, %v430
    %v432 = vpop.f32.mrb[0].mxu0
    %433 = vmatprep.mubr.bf16.mxu0 0
    %434 = vmatmul.mubr.bf16.gmra.mrb[0].mxu0 %v277
    %v435 = vpop.f32.mrb[0].mxu0
    %v436 = vadd.f32 0.0, %v435
    %v437 = vpop.f32.mrb[0].mxu0
    %v438 = vpop.f32.mrb[0].mxu0
    %v439 = vadd.f32 0.0, %v438
    %v440 = vpop.f32.mrb[0].mxu0
    %441 = vmatprep.mubr.bf16.mxu0 0
    %442 = vmatmul.mubr.bf16.gmra.mrb[0].mxu0 %v280
    %v443 = vpop.f32.mrb[0].mxu0
    %v444 = vadd.f32 0.0, %v443
    %v445 = vpop.f32.mrb[0].mxu0
    %v446 = vpop.f32.mrb[0].mxu0
    %v447 = vadd.f32 0.0, %v446
    %v448 = vpop.f32.mrb[0].mxu0
    %449 = vmatprep.mubr.bf16.mxu0 0
    %450 = vmatmul.mubr.bf16.gmra.mrb[0].mxu0 %v283
    %v451 = vpop.f32.mrb[0].mxu0
    %v452 = vadd.f32 0.0, %v451
    %v453 = vpop.f32.mrb[0].mxu0
    %v454 = vpop.f32.mrb[0].mxu0
    %v455 = vadd.f32 0.0, %v454
    %v456 = vpop.f32.mrb[0].mxu0
    %457 = vmatprep.mubr.bf16.mxu0 0
    %458 = vmatmul.mubr.bf16.gmra.mrb[0].mxu0 %v286
    %v459 = vpop.f32.mrb[0].mxu0
    %v460 = vadd.f32 0.0, %v459
    %v461 = vpop.f32.mrb[0].mxu0
    %v462 = vpop.f32.mrb[0].mxu0
    %v463 = vadd.f32 0.0, %v462
    %v464 = vpop.f32.mrb[0].mxu0
    %465 = vmatprep.mubr.bf16.mxu0 0
    %466 = vmatmul.mubr.bf16.gmra.mrb[0].mxu0 %v289
    %v467 = vpop.f32.mrb[0].mxu0
    %v468 = vadd.f32 0.0, %v467
    %v469 = vpop.f32.mrb[0].mxu0
    %v470 = vpop.f32.mrb[0].mxu0
    %v471 = vadd.f32 0.0, %v470
    %v472 = vpop.f32.mrb[0].mxu0
    %473 = vmatprep.mubr.bf16.mxu0 0
    %474 = vmatmul.mubr.bf16.gmra.mrb[0].mxu0 %v292
    %v475 = vpop.f32.mrb[0].mxu0
    %v476 = vadd.f32 0.0, %v475
    %v477 = vpop.f32.mrb[0].mxu0
    %v478 = vpop.f32.mrb[0].mxu0
    %v479 = vadd.f32 0.0, %v478
    %v480 = vpop.f32.mrb[0].mxu0
    %481 = vmatprep.mubr.bf16.mxu0 0
    %482 = vmatmul.mubr.bf16.gmra.mrb[0].mxu0 %v295
    %v483 = vpop.f32.mrb[0].mxu0
    %v484 = vadd.f32 0.0, %v483
    %v485 = vpop.f32.mrb[0].mxu0
    %v486 = vpop.f32.mrb[0].mxu0
    %v487 = vadd.f32 0.0, %v486
    %v488 = vpop.f32.mrb[0].mxu0
    %489 = vmatprep.mubr.bf16.mxu0 0
    %490 = vmatmul.mubr.bf16.gmra.mrb[0].mxu0 %v298
    %v491 = vpop.f32.mrb[0].mxu0
    %v492 = vadd.f32 0.0, %v491
    %v493 = vpop.f32.mrb[0].mxu0
    %v494 = vpop.f32.mrb[0].mxu0
    %v495 = vadd.f32 0.0, %v494
    %v496 = vpop.f32.mrb[0].mxu0
    %497 = vmatprep.mubr.bf16.mxu0 0
    %498 = vmatmul.mubr.bf16.gmra.mrb[0].mxu0 %v301
    %v499 = vpop.f32.mrb[0].mxu0
    %v500 = vadd.f32 0.0, %v499
    %v501 = vpop.f32.mrb[0].mxu0
    %v502 = vpop.f32.mrb[0].mxu0
    %v503 = vadd.f32 0.0, %v502
    %v504 = vpop.f32.mrb[0].mxu0
    %505 = vmatprep.mubr.bf16.mxu0 0
    %506 = vmatmul.mubr.bf16.gmra.mrb[0].mxu0 %v304
    %v507 = vpop.f32.mrb[0].mxu0
    %v508 = vadd.f32 0.0, %v507
    %v509 = vpop.f32.mrb[0].mxu0
    %v510 = vpop.f32.mrb[0].mxu0
    %v511 = vadd.f32 0.0, %v510
    %v512 = vpop.f32.mrb[0].mxu0
    %513 = vmatprep.mubr.bf16.mxu0 0
    %514 = vmatmul.mubr.bf16.gmra.mrb[0].mxu0 %v307
    %v515 = vpop.f32.mrb[0].mxu0
    %v516 = vadd.f32 0.0, %v515
    %v517 = vpop.f32.mrb[0].mxu0
    %v518 = vpop.f32.mrb[0].mxu0
    %v519 = vadd.f32 0.0, %v518
    %v520 = vpop.f32.mrb[0].mxu0
    %521 = vmatprep.mubr.bf16.mxu0 0
    %522 = vmatmul.mubr.bf16.gmra.mrb[0].mxu0 %v310
    %v523 = vpop.f32.mrb[0].mxu0
    %v524 = vadd.f32 0.0, %v523
    %v525 = vpop.f32.mrb[0].mxu0
    %v526 = vpop.f32.mrb[0].mxu0
    %v527 = vadd.f32 0.0, %v526
    %v528 = vpop.f32.mrb[0].mxu0
    %529 = vmatprep.mubr.bf16.mxu0 0
    %530 = vmatmul.mubr.bf16.gmra.mrb[0].mxu0 %v313
    %v531 = vpop.f32.mrb[0].mxu0
    %v532 = vadd.f32 0.0, %v531
    %v533 = vpop.f32.mrb[0].mxu0
    %v534 = vpop.f32.mrb[0].mxu0
    %v535 = vadd.f32 0.0, %v534
    %v536 = vpop.f32.mrb[0].mxu0
    %537 = vmatprep.mubr.bf16.mxu0 0
    %538 = vmatmul.mubr.bf16.gmra.mrb[0].mxu0 %v316
    %v539 = vpop.f32.mrb[0].mxu0
    %v540 = vadd.f32 0.0, %v539
    %v541 = vpop.f32.mrb[0].mxu0
    %v542 = vpop.f32.mrb[0].mxu0
    %v543 = vadd.f32 0.0, %v542
    %v544 = vpop.f32.mrb[0].mxu0
    %545 = vmatprep.mubr.bf16.mxu0 0
    %546 = vmatmul.mubr.bf16.gmra.mrb[0].mxu0 %v319
    %v547 = vpop.f32.mrb[0].mxu0
    %v548 = vadd.f32 0.0, %v547
    %v549 = vpop.f32.mrb[0].mxu0
    %v550 = vpop.f32.mrb[0].mxu0
    %v551 = vadd.f32 0.0, %v550
    %v552 = vpop.f32.mrb[0].mxu0
    %553 = vmatprep.mubr.bf16.mxu0 0
    %554 = vmatmul.mubr.bf16.gmra.mrb[0].mxu0 %v322
    %v555 = vpop.f32.mrb[0].mxu0
    %v556 = vadd.f32 0.0, %v555
    %v557 = vpop.f32.mrb[0].mxu0
    %v558 = vpop.f32.mrb[0].mxu0
    %v559 = vadd.f32 0.0, %v558
    %v560 = vpop.f32.mrb[0].mxu0
    %561 = vmatprep.mubr.bf16.mxu0 0
    %562 = vmatmul.mubr.bf16.gmra.mrb[0].mxu0 %v325
    %v563 = vpop.f32.mrb[0].mxu0
    %v564 = vadd.f32 0.0, %v563
    %v565 = vpop.f32.mrb[0].mxu0
    %v566 = vpop.f32.mrb[0].mxu0
    %v567 = vadd.f32 0.0, %v566
    %v568 = vpop.f32.mrb[0].mxu0
    %569 = vmatprep.mubr.bf16.mxu0 0
    %570 = vmatmul.mubr.bf16.gmra.mrb[0].mxu0 %v328
    %v571 = vpop.f32.mrb[0].mxu0
    %v572 = vadd.f32 0.0, %v571
    %v573 = vpop.f32.mrb[0].mxu0
    %v574 = vpop.f32.mrb[0].mxu0
    %v575 = vadd.f32 0.0, %v574
    %v576 = vpop.f32.mrb[0].mxu0
    %577 = vmatprep.mubr.bf16.mxu0 0
    %578 = vmatmul.mubr.bf16.gmra.mrb[0].mxu0 %v331
    %v579 = vpop.f32.mrb[0].mxu0
    %v580 = vadd.f32 0.0, %v579
    %v581 = vpop.f32.mrb[0].mxu0
    %v582 = vpop.f32.mrb[0].mxu0
    %v583 = vadd.f32 0.0, %v582
    %v584 = vpop.f32.mrb[0].mxu0
    %585 = vmatprep.mubr.bf16.mxu0 0
    %586 = vmatmul.mubr.bf16.gmra.mrb[0].mxu0 %v334
    %v587 = vpop.f32.mrb[0].mxu0
    %v588 = vadd.f32 0.0, %v587
    %v589 = vpop.f32.mrb[0].mxu0
    %v590 = vpop.f32.mrb[0].mxu0
    %v591 = vadd.f32 0.0, %v590
    %v592 = vpop.f32.mrb[0].mxu0
    %593 = vmatprep.mubr.bf16.mxu0 0
    %594 = vmatmul.mubr.bf16.gmra.mrb[0].mxu0 %v337
    %v595 = vpop.f32.mrb[0].mxu0
    %v596 = vadd.f32 0.0, %v595
    %v597 = vpop.f32.mrb[0].mxu0
    %v598 = vpop.f32.mrb[0].mxu0
    %v599 = vadd.f32 0.0, %v598
    %v600 = vpop.f32.mrb[0].mxu0
    %601 = vmatprep.mubr.bf16.mxu0 0
    %602 = vmatmul.mubr.bf16.gmra.mrb[0].mxu0 %v340
    %v603 = vpop.f32.mrb[0].mxu0
    %v604 = vadd.f32 0.0, %v603
    %v605 = vpop.f32.mrb[0].mxu0
    %v606 = vpop.f32.mrb[0].mxu0
    %v607 = vadd.f32 0.0, %v606
    %v608 = vpop.f32.mrb[0].mxu0
    %609 = vmatprep.mubr.bf16.mxu0 0
    %610 = vmatmul.mubr.bf16.gmra.mrb[0].mxu0 %v343
    %v611 = vpop.f32.mrb[0].mxu0
    %v612 = vadd.f32 0.0, %v611
    %v613 = vpop.f32.mrb[0].mxu0
    %v614 = vpop.f32.mrb[0].mxu0
    %v615 = vadd.f32 0.0, %v614
    %v616 = vpop.f32.mrb[0].mxu0
    %617 = vmatprep.mubr.bf16.mxu0 0
    %618 = vmatmul.mubr.bf16.gmra.mrb[0].mxu0 %v346
    %v619 = vpop.f32.mrb[0].mxu0
    %v620 = vadd.f32 0.0, %v619
    %v621 = vpop.f32.mrb[0].mxu0
    %v622 = vpop.f32.mrb[0].mxu0
    %v623 = vadd.f32 0.0, %v622
    %v624 = vpop.f32.mrb[0].mxu0
    %625 = vmatprep.mubr.bf16.mxu0 0
    %626 = vmatmul.mubr.bf16.gmra.mrb[0].mxu0 %v349
    %v627 = vpop.f32.mrb[0].mxu0
    %v628 = vadd.f32 0.0, %v627
    %v629 = vpop.f32.mrb[0].mxu0
    %v630 = vpop.f32.mrb[0].mxu0
    %v631 = vadd.f32 0.0, %v630
    %v632 = vpop.f32.mrb[0].mxu0
    %633 = vmatprep.mubr.bf16.mxu0 0
    %634 = vmatmul.mubr.bf16.gmra.mrb[0].mxu0 %v352
    %v635 = vpop.f32.mrb[0].mxu0
    %v636 = vadd.f32 0.0, %v635
    %v637 = vpop.f32.mrb[0].mxu0
    %v638 = vpop.f32.mrb[0].mxu0
    %v639 = vadd.f32 0.0, %v638
    %v640 = vpop.f32.mrb[0].mxu0
    %641 = vmatprep.mubr.bf16.mxu0 0
    %642 = vmatmul.mubr.bf16.gmra.mrb[0].mxu0 %v355
    %v643 = vpop.f32.mrb[0].mxu0
    %v644 = vadd.f32 0.0, %v643
    %v645 = vpop.f32.mrb[0].mxu0
    %v646 = vpop.f32.mrb[0].mxu0
    %v647 = vadd.f32 0.0, %v646
    %v648 = vpop.f32.mrb[0].mxu0
    %649 = vdwg.mxu0
    %v650 = vadd.f32 %v396, %v399
    %v651 = vadd.f32 %v650, %v404
    %v652 = vadd.f32 %v651, %v407
    %v653 = vadd.f32 %v652, %v412
    %v654 = vadd.f32 %v653, %v415
    %v655 = vadd.f32 %v654, %v420
    %v656 = vadd.f32 %v655, %v423
    %v657 = vadd.f32 %v656, %v428
    %v658 = vadd.f32 %v657, %v431
    %v659 = vadd.f32 %v658, %v436
    %v660 = vadd.f32 %v659, %v439
    %v661 = vadd.f32 %v660, %v444
    %v662 = vadd.f32 %v661, %v447
    %v663 = vadd.f32 %v662, %v452
    %v664 = vadd.f32 %v663, %v455
    %v665 = vadd.f32 %v664, %v460
    %v666 = vadd.f32 %v665, %v463
    %v667 = vadd.f32 %v666, %v468
    %v668 = vadd.f32 %v667, %v471
    %v669 = vadd.f32 %v668, %v476
    %v670 = vadd.f32 %v669, %v479
    %v671 = vadd.f32 %v670, %v484
    %v672 = vadd.f32 %v671, %v487
    %v673 = vadd.f32 %v672, %v492
    %v674 = vadd.f32 %v673, %v495
    %v675 = vadd.f32 %v674, %v500
    %v676 = vadd.f32 %v675, %v503
    %v677 = vadd.f32 %v676, %v508
    %v678 = vadd.f32 %v677, %v511
    %v679 = vadd.f32 %v678, %v516
    %v680 = vadd.f32 %v679, %v519
    %v681 = vadd.f32 %v680, %v524
    %v682 = vadd.f32 %v681, %v527
    %v683 = vadd.f32 %v682, %v532
    %v684 = vadd.f32 %v683, %v535
    %v685 = vadd.f32 %v684, %v540
    %v686 = vadd.f32 %v685, %v543
    %v687 = vadd.f32 %v686, %v548
    %v688 = vadd.f32 %v687, %v551
    %v689 = vadd.f32 %v688, %v556
    %v690 = vadd.f32 %v689, %v559
    %v691 = vadd.f32 %v690, %v564
    %v692 = vadd.f32 %v691, %v567
    %v693 = vadd.f32 %v692, %v572
    %v694 = vadd.f32 %v693, %v575
    %v695 = vadd.f32 %v694, %v580
    %v696 = vadd.f32 %v695, %v583
    %v697 = vadd.f32 %v696, %v588
    %v698 = vadd.f32 %v697, %v591
    %v699 = vadd.f32 %v698, %v596
    %v700 = vadd.f32 %v699, %v599
    %v701 = vadd.f32 %v700, %v604
    %v702 = vadd.f32 %v701, %v607
    %v703 = vadd.f32 %v702, %v612
    %v704 = vadd.f32 %v703, %v615
    %v705 = vadd.f32 %v704, %v620
    %v706 = vadd.f32 %v705, %v623
    %v707 = vadd.f32 %v706, %v628
    %v708 = vadd.f32 %v707, %v631
    %v709 = vadd.f32 %v708, %v636
    %v710 = vadd.f32 %v709, %v639
    %v711 = vadd.f32 %v710, %v644
    %v712 = vadd.f32 %v711, %v647
    %713 = vst [vmem:[#allocation2] sm:$0xff] %v712
    %v714 = vmul.f32 %v396, %v396
    %v715 = vmul.f32 %v399, %v399
    %v716 = vmul.f32 %v404, %v404
    %v717 = vmul.f32 %v407, %v407
    %v718 = vmul.f32 %v412, %v412
    %v719 = vmul.f32 %v415, %v415
    %v720 = vmul.f32 %v420, %v420
    %v721 = vmul.f32 %v423, %v423
    %v722 = vmul.f32 %v428, %v428
    %v723 = vmul.f32 %v431, %v431
    %v724 = vmul.f32 %v436, %v436
    %v725 = vmul.f32 %v439, %v439
    %v726 = vmul.f32 %v444, %v444
    %v727 = vmul.f32 %v447, %v447
    %v728 = vmul.f32 %v452, %v452
    %v729 = vmul.f32 %v455, %v455
    %v730 = vmul.f32 %v460, %v460
    %v731 = vmul.f32 %v463, %v463
    %v732 = vmul.f32 %v468, %v468
    %v733 = vmul.f32 %v471, %v471
    %v734 = vmul.f32 %v476, %v476
    %v735 = vmul.f32 %v479, %v479
    %v736 = vmul.f32 %v484, %v484
    %v737 = vmul.f32 %v487, %v487
    %v738 = vmul.f32 %v492, %v492
    %v739 = vmul.f32 %v495, %v495
    %v740 = vmul.f32 %v500, %v500
    %v741 = vmul.f32 %v503, %v503
    %v742 = vmul.f32 %v508, %v508
    %v743 = vmul.f32 %v511, %v511
    %v744 = vmul.f32 %v516, %v516
    %v745 = vmul.f32 %v519, %v519
    %v746 = vmul.f32 %v524, %v524
    %v747 = vmul.f32 %v527, %v527
    %v748 = vmul.f32 %v532, %v532
    %v749 = vmul.f32 %v535, %v535
    %v750 = vmul.f32 %v540, %v540
    %v751 = vmul.f32 %v543, %v543
    %v752 = vmul.f32 %v548, %v548
    %v753 = vmul.f32 %v551, %v551
    %v754 = vmul.f32 %v556, %v556
    %v755 = vmul.f32 %v559, %v559
    %v756 = vmul.f32 %v564, %v564
    %v757 = vmul.f32 %v567, %v567
    %v758 = vmul.f32 %v572, %v572
    %v759 = vmul.f32 %v575, %v575
    %v760 = vmul.f32 %v580, %v580
    %v761 = vmul.f32 %v583, %v583
    %v762 = vmul.f32 %v588, %v588
    %v763 = vmul.f32 %v591, %v591
    %v764 = vmul.f32 %v596, %v596
    %v765 = vmul.f32 %v599, %v599
    %v766 = vmul.f32 %v604, %v604
    %v767 = vmul.f32 %v607, %v607
    %v768 = vmul.f32 %v612, %v612
    %v769 = vmul.f32 %v615, %v615
    %v770 = vmul.f32 %v620, %v620
    %v771 = vmul.f32 %v623, %v623
    %v772 = vmul.f32 %v628, %v628
    %v773 = vmul.f32 %v631, %v631
    %v774 = vmul.f32 %v636, %v636
    %v775 = vmul.f32 %v639, %v639
    %v776 = vmul.f32 %v644, %v644
    %v777 = vmul.f32 %v647, %v647
    %v778 = vadd.f32 %v714, %v715
    %v779 = vadd.f32 %v778, %v716
    %v780 = vadd.f32 %v779, %v717
    %v781 = vadd.f32 %v780, %v718
    %v782 = vadd.f32 %v781, %v719
    %v783 = vadd.f32 %v782, %v720
    %v784 = vadd.f32 %v783, %v721
    %v785 = vadd.f32 %v784, %v722
    %v786 = vadd.f32 %v785, %v723
    %v787 = vadd.f32 %v786, %v724
    %v788 = vadd.f32 %v787, %v725
    %v789 = vadd.f32 %v788, %v726
    %v790 = vadd.f32 %v789, %v727
    %v791 = vadd.f32 %v790, %v728
    %v792 = vadd.f32 %v791, %v729
    %v793 = vadd.f32 %v792, %v730
    %v794 = vadd.f32 %v793, %v731
    %v795 = vadd.f32 %v794, %v732
    %v796 = vadd.f32 %v795, %v733
    %v797 = vadd.f32 %v796, %v734
    %v798 = vadd.f32 %v797, %v735
    %v799 = vadd.f32 %v798, %v736
    %v800 = vadd.f32 %v799, %v737
    %v801 = vadd.f32 %v800, %v738
    %v802 = vadd.f32 %v801, %v739
    %v803 = vadd.f32 %v802, %v740
    %v804 = vadd.f32 %v803, %v741
    %v805 = vadd.f32 %v804, %v742
    %v806 = vadd.f32 %v805, %v743
    %v807 = vadd.f32 %v806, %v744
    %v808 = vadd.f32 %v807, %v745
    %v809 = vadd.f32 %v808, %v746
    %v810 = vadd.f32 %v809, %v747
    %v811 = vadd.f32 %v810, %v748
    %v812 = vadd.f32 %v811, %v749
    %v813 = vadd.f32 %v812, %v750
    %v814 = vadd.f32 %v813, %v751
    %v815 = vadd.f32 %v814, %v752
    %v816 = vadd.f32 %v815, %v753
    %v817 = vadd.f32 %v816, %v754
    %v818 = vadd.f32 %v817, %v755
    %v819 = vadd.f32 %v818, %v756
    %v820 = vadd.f32 %v819, %v757
    %v821 = vadd.f32 %v820, %v758
    %v822 = vadd.f32 %v821, %v759
    %v823 = vadd.f32 %v822, %v760
    %v824 = vadd.f32 %v823, %v761
    %v825 = vadd.f32 %v824, %v762
    %v826 = vadd.f32 %v825, %v763
    %v827 = vadd.f32 %v826, %v764
    %v828 = vadd.f32 %v827, %v765
    %v829 = vadd.f32 %v828, %v766
    %v830 = vadd.f32 %v829, %v767
    %v831 = vadd.f32 %v830, %v768
    %v832 = vadd.f32 %v831, %v769
    %v833 = vadd.f32 %v832, %v770
    %v834 = vadd.f32 %v833, %v771
    %v835 = vadd.f32 %v834, %v772
    %v836 = vadd.f32 %v835, %v773
    %v837 = vadd.f32 %v836, %v774
    %v838 = vadd.f32 %v837, %v775
    %v839 = vadd.f32 %v838, %v776
    %v840 = vadd.f32 %v839, %v777
    %841 = vst [vmem:[#allocation4] sm:$0xff] %v840
    // Predicated region
    $region10: #{tpu_custom_call.1} parent=1 // pred_check
      _
    $region11: #{tpu_custom_call.1} parent=1 // pred_check_branch
      %843 = sbr.rel (0) target = $region13
    $region12: #{tpu_custom_call.1} parent=1 // pred_region
      %s845 = ssub.s32 128, 128
      %846 = vsyncadd [#allocation3], %s845
      %s848 = sshll.u32 [#allocation2], 4
      %s849 = int_to_ptr.vmem [resolvable:$true] %s848
      %851 = dma.vmem_to_hbm [thread:$0]  %s849, 128, %s2, [#allocation3]
    $region13: #{tpu_custom_call.1} parent=1 // pred_fallthru
      _
    // Predicated region
    $region14: #{tpu_custom_call.1} parent=1 // pred_check
      _
    $region15: #{tpu_custom_call.1} parent=1 // pred_check_branch
      %853 = sbr.rel (0) target = $region17
    $region16: #{tpu_custom_call.1} parent=1 // pred_region
      %s855 = ssub.s32 128, 128
      %856 = vsyncadd [#allocation5], %s855
      %s858 = sshll.u32 [#allocation4], 4
      %s859 = int_to_ptr.vmem [resolvable:$true] %s858
      %861 = dma.vmem_to_hbm [thread:$0]  %s859, 128, %s3, [#allocation5]
    $region17: #{tpu_custom_call.1} parent=1 // pred_fallthru
      _
    // Predicated region
    $region18: #{tpu_custom_call.1} parent=1 // pred_check
      _
    $region19: #{tpu_custom_call.1} parent=1 // pred_check_branch
      %863 = sbr.rel (0) target = $region21
    $region20: #{tpu_custom_call.1} parent=1 // pred_region
      %864 = dma.done [#allocation3], 128
    $region21: #{tpu_custom_call.1} parent=1 // pred_fallthru
      _
    // Predicated region
    $region22: #{tpu_custom_call.1} parent=1 // pred_check
      _
    $region23: #{tpu_custom_call.1} parent=1 // pred_check_branch
      %866 = sbr.rel (0) target = $region25
    $region24: #{tpu_custom_call.1} parent=1 // pred_region
      %867 = dma.done [#allocation5], 128
    $region25: #{tpu_custom_call.1} parent=1 // pred_fallthru
      _
    %868 = vsyncpa [#allocation3], 1
    %869 = vsyncpa [#allocation5], 1

</llo_original>
